<compile_context>
chip_gen: v6e
topology: v6e:2x2x1
jax: 0.10.0
libtpu: 0.0.40
codegen_flags: <defaults>
</compile_context>

<pallas_src>
import math

import jax
import jax.numpy as jnp
from jax.experimental import pallas as pl
from jax.experimental.pallas import tpu as pltpu


_GELU_C = math.sqrt(2.0 / math.pi)


# --------------------- Pallas kernel: split-weight Linear + GELU(tanh) ---------------------

def _dense_gelu_kernel(xn_ref, xc_ref, xs_ref, wn_ref, wc_ref, ws_ref, b_ref, o_ref):
    # xn:(TB,En) xc:(TB,Ec) xs:(TB,Ec)  wn:(En,T) wc:(Ec,T) ws:(Ec,T)  b:(1,T)  o:(TB,T)
    # Matmuls on the MXU with f32 accumulation; all element-wise math stays f32.
    h = jnp.dot(xn_ref[...], wn_ref[...], preferred_element_type=jnp.float32)
    h = h + jnp.dot(xc_ref[...], wc_ref[...], preferred_element_type=jnp.float32)
    h = h + jnp.dot(xs_ref[...], ws_ref[...], preferred_element_type=jnp.float32)
    h = h + b_ref[...]
    # GELU exactly as the PyTorch module: 0.5*x*(1+tanh(sqrt(2/pi)*(x+0.044715*x^3)))
    # written as c*h*(1 + 0.044715*h^2) to reuse h*h (fewer VALU multiplies).
    hh = h * h
    inner = _GELU_C * h * (1.0 + 0.044715 * hh)
    o_ref[...] = (0.5 * h * (1.0 + jnp.tanh(inner))).astype(o_ref.dtype)


def _round_up(n, m):
    return ((n + m - 1) // m) * m


def _pad_rows(x, target):
    return x if x.shape[0] == target else jnp.pad(x, ((0, target - x.shape[0]), (0, 0)))


def _pad_cols(x, target):
    return x if x.shape[1] == target else jnp.pad(x, ((0, 0), (0, target - x.shape[1])))


def dense_gelu_split(x_news, x_cat, x_sub, w_news, w_cat, w_sub, b,
                     *, tile_b=512, use_bf16=True):
    """GELU( xn@Wn + xc@Wc + xs@Ws + b ), tiled over the batch dimension."""
    B, En = x_news.shape
    Ec = x_cat.shape[1]
    assert x_sub.shape == (B, Ec)
    T = w_news.shape[1]
    assert w_cat.shape == (Ec, T) and w_sub.shape == (Ec, T)

    T_pad = _round_up(T, 128)                      # lane-dense output (unmasked vst)
    in_dtype = jnp.bfloat16 if use_bf16 else jnp.float32
    in_bytes = 2 if use_bf16 else 4
    F = En + 2 * Ec

    # Batch tile: large by default, but never bigger than the (8-aligned) batch, and shrunk
    # until the double-buffered footprint fits comfortably in the smallest VMEM (v7x: 64 MiB/TC).
    tile_b = min(tile_b, max(8, _round_up(B, 8)))

    def _footprint(tb):
        x_buf = 2 * tb * F * in_bytes              # double-buffered activation tiles
        w_buf = 2 * F * T_pad * in_bytes           # resident weights (double-buffered spec)
        o_buf = 2 * tb * T_pad * 4                 # double-buffered f32 output tile
        tmp = 4 * tb * T_pad * 4                   # f32 accumulator / GELU temporaries
        return x_buf + w_buf + o_buf + tmp + 2 * T_pad * 4

    while tile_b > 8 and _footprint(tile_b) > (64 << 20) // 3:
        tile_b = max(8, _round_up(tile_b // 2, 8))

    B_pad = _round_up(B, tile_b)                   # zero-pad batch (safe through tanh: gelu(0)=0)

    xn = _pad_rows(x_news.astype(in_dtype), B_pad)
    xc = _pad_rows(x_cat.astype(in_dtype), B_pad)
    xs = _pad_rows(x_sub.astype(in_dtype), B_pad)
    wn = _pad_cols(w_news.astype(in_dtype), T_pad)
    wc = _pad_cols(w_cat.astype(in_dtype), T_pad)
    ws = _pad_cols(w_sub.astype(in_dtype), T_pad)
    b2 = _pad_cols(b.reshape(1, T).astype(jnp.float32), T_pad)

    flops = 2 * B_pad * F * T_pad
    bytes_accessed = (3 * B_pad * F // 3 * 0 +     # (kept explicit below)
                      (xn.size + xc.size + xs.size + wn.size + wc.size + ws.size) * in_bytes
                      + b2.size * 4 + B_pad * T_pad * 4)
    cost = pl.CostEstimate(flops=flops,
                           transcendentals=B_pad * T_pad,
                           bytes_accessed=int(bytes_accessed))

    fp = _footprint(tile_b)
    vmem_limit = min(int(fp * 1.5), 100 * 1024 * 1024) if fp > 24 * 1024 * 1024 else None

    out = pl.pallas_call(
        _dense_gelu_kernel,
        out_shape=jax.ShapeDtypeStruct((B_pad, T_pad), jnp.float32),
        grid_spec=pltpu.PrefetchScalarGridSpec(
            num_scalar_prefetch=0,
            grid=(B_pad // tile_b,),
            in_specs=[
                pl.BlockSpec((tile_b, En), lambda i: (i, 0)),   # streamed activations
                pl.BlockSpec((tile_b, Ec), lambda i: (i, 0)),
                pl.BlockSpec((tile_b, Ec), lambda i: (i, 0)),
                pl.BlockSpec((En, T_pad), lambda i: (0, 0)),    # grid-invariant weights
                pl.BlockSpec((Ec, T_pad), lambda i: (0, 0)),
                pl.BlockSpec((Ec, T_pad), lambda i: (0, 0)),
                pl.BlockSpec((1, T_pad), lambda i: (0, 0)),     # bias
            ],
            out_specs=pl.BlockSpec((tile_b, T_pad), lambda i: (i, 0)),
        ),
        compiler_params=pltpu.CompilerParams(
            dimension_semantics=("parallel",),
            vmem_limit_bytes=vmem_limit,
        ),
        cost_estimate=cost,
    )(xn, xc, xs, wn, wc, ws, b2)

    return out[:B, :T]


# ------------------------------------ NewsEncoder forward ------------------------------------

def news_encoder_forward(params, news_ids, news_categ, news_subcateg,
                         *, tile_b=512, use_bf16=True):
    # Embedding lookups (gathers) stay in plain JAX; no concat is materialized — the dense layer
    # weights are split row-wise and the three slabs are consumed directly by the kernel.
    news_embeds = jnp.take(params["news_embedding"], news_ids, axis=0)                 # (B, bert_E)
    categ_embeds = jnp.take(params["category_embedding"], news_categ, axis=0)          # (B, cate_E)
    subcateg_embeds = jnp.take(params["subcategory_embedding"], news_subcateg, axis=0)  # (B, cate_E)

    En = news_embeds.shape[1]
    Ec = categ_embeds.shape[1]
    w = params["dense_w"]
    w_news = w[:En]
    w_cat = w[En:En + Ec]
    w_sub = w[En + Ec:]

    out = dense_gelu_split(news_embeds, categ_embeds, subcateg_embeds,
                           w_news, w_cat, w_sub, params["dense_b"],
                           tile_b=tile_b, use_bf16=use_bf16)
    # Dropout is identity in inference mode.
    # TODO(synk): training-mode dropout (stateful PRNG masking) not implemented.
    return out


# ---------------------------------------- setup / main ----------------------------------------

def init_params(key, *, category_nums, subcategory_nums, news_nums,
                cate_embed_size, bert_embed_size, title_size):
    feature_size = bert_embed_size + 2 * cate_embed_size
    k1, k2, k3, k4, k5 = jax.random.split(key, 5)

    category_embedding = 0.02 * jax.random.normal(k1, (category_nums, cate_embed_size), jnp.float32)
    category_embedding = category_embedding.at[0].set(0.0)         # padding_idx=0
    subcategory_embedding = 0.02 * jax.random.normal(k2, (subcategory_nums, cate_embed_size), jnp.float32)
    subcategory_embedding = subcategory_embedding.at[0].set(0.0)   # padding_idx=0
    news_embedding = 0.02 * jax.random.normal(k3, (news_nums, bert_embed_size), jnp.float32)  # frozen "pretrained"

    bound = 1.0 / math.sqrt(feature_size)
    dense_w = jax.random.uniform(k4, (feature_size, title_size), jnp.float32, -bound, bound)
    dense_b = jax.random.uniform(k5, (title_size,), jnp.float32, -bound, bound)

    return {
        "category_embedding": category_embedding,
        "subcategory_embedding": subcategory_embedding,
        "news_embedding": news_embedding,
        "dense_w": dense_w,
        "dense_b": dense_b,
    }


if __name__ == "__main__":
    key = jax.random.PRNGKey(0)

    # Small config; title_size deliberately not a multiple of 128 to exercise lane padding.
    B = 8
    category_nums = 20
    subcategory_nums = 30
    news_nums = 50
    cate_embed_size = 32
    bert_embed_size = 64
    title_size = 100

    pkey, ikey = jax.random.split(key)
    params = init_params(
        pkey,
        category_nums=category_nums,
        subcategory_nums=subcategory_nums,
        news_nums=news_nums,
        cate_embed_size=cate_embed_size,
        bert_embed_size=bert_embed_size,
        title_size=title_size,
    )

    k_ids, k_cat, k_sub = jax.random.split(ikey, 3)
    news_ids = jax.random.randint(k_ids, (B,), 0, news_nums, dtype=jnp.int32)
    news_categ = jax.random.randint(k_cat, (B,), 0, category_nums, dtype=jnp.int32)
    news_subcateg = jax.random.randint(k_sub, (B,), 0, subcategory_nums, dtype=jnp.int32)

    # bf16-input fast path (production default) and f32 parity path.
    out_bf16 = jax.block_until_ready(
        news_encoder_forward(params, news_ids, news_categ, news_subcateg, use_bf16=True))
    out_f32 = jax.block_until_ready(
        news_encoder_forward(params, news_ids, news_categ, news_subcateg, use_bf16=False))

    # Reference in plain JAX (same math as the PyTorch module, no kernel).
    x_ref = jnp.concatenate(
        [jnp.take(params["news_embedding"], news_ids, axis=0),
         jnp.take(params["category_embedding"], news_categ, axis=0),
         jnp.take(params["subcategory_embedding"], news_subcateg, axis=0)], axis=-1)
    h_ref = x_ref @ params["dense_w"] + params["dense_b"]
    ref = 0.5 * h_ref * (1.0 + jnp.tanh(math.sqrt(2.0 / math.pi) * (h_ref + 0.044715 * h_ref ** 3)))

    assert out_bf16.shape == (B, title_size)
    assert out_f32.shape == (B, title_size)
    assert jnp.allclose(out_f32, ref, atol=1e-5, rtol=1e-5)        # exact-precision parity
    assert jnp.allclose(out_bf16, ref, atol=2e-2, rtol=2e-2)       # bf16 inputs, f32 accumulate

    print("KERNEL_OK")
</pallas_src>

<mosaic_0001>
module attributes {stable_mosaic.version = 11 : i64} {
  func.func @_dense_gelu_kernel(%arg0: i32, %arg1: memref<8x64xbf16, #tpu.memory_space<vmem>>, %arg2: memref<8x32xbf16, #tpu.memory_space<vmem>>, %arg3: memref<8x32xbf16, #tpu.memory_space<vmem>>, %arg4: memref<64x128xbf16, #tpu.memory_space<vmem>>, %arg5: memref<32x128xbf16, #tpu.memory_space<vmem>>, %arg6: memref<32x128xbf16, #tpu.memory_space<vmem>>, %arg7: memref<1x128xf32, #tpu.memory_space<vmem>>, %arg8: memref<8x128xf32, #tpu.memory_space<vmem>>) attributes {dimension_semantics = [#tpu.dimension_semantics<parallel>], iteration_bounds = array<i64: 1>, scalar_prefetch = 0 : i64, scratch_operands = 0 : i64, tpu.core_type = #tpu.core_type<tc>, window_params = [{transform_indices = @transform_0, window_bounds = array<i64: 8, 64>}, {transform_indices = @transform_1, window_bounds = array<i64: 8, 32>}, {transform_indices = @transform_2, window_bounds = array<i64: 8, 32>}, {pipeline_mode = #tpu.pipeline_mode<synchronous>, transform_indices = @transform_3, window_bounds = array<i64: 64, 128>}, {pipeline_mode = #tpu.pipeline_mode<synchronous>, transform_indices = @transform_4, window_bounds = array<i64: 32, 128>}, {pipeline_mode = #tpu.pipeline_mode<synchronous>, transform_indices = @transform_5, window_bounds = array<i64: 32, 128>}, {pipeline_mode = #tpu.pipeline_mode<synchronous>, transform_indices = @transform_6, window_bounds = array<i64: 1, 128>}, {transform_indices = @transform_7, window_bounds = array<i64: 8, 128>}]} {
    %c0 = arith.constant 0 : index
    %c0_0 = arith.constant 0 : index
    %0 = vector.load %arg1[%c0, %c0_0] : memref<8x64xbf16, #tpu.memory_space<vmem>>, vector<8x64xbf16>
    %c0_1 = arith.constant 0 : index
    %c0_2 = arith.constant 0 : index
    %1 = vector.load %arg4[%c0_1, %c0_2] : memref<64x128xbf16, #tpu.memory_space<vmem>>, vector<64x128xbf16>
    %cst = arith.constant dense<0.000000e+00> : vector<8x128xf32>
    %2 = tpu.matmul %0, %1, %cst {dimension_numbers = #tpu.dot_dimension_numbers<[1], [0], [0], [1], [0, 0, 1, 1], [], []>} : vector<8x64xbf16>, vector<64x128xbf16>, vector<8x128xf32> -> vector<8x128xf32>
    %c0_3 = arith.constant 0 : index
    %c0_4 = arith.constant 0 : index
    %3 = vector.load %arg2[%c0_3, %c0_4] : memref<8x32xbf16, #tpu.memory_space<vmem>>, vector<8x32xbf16>
    %c0_5 = arith.constant 0 : index
    %c0_6 = arith.constant 0 : index
    %4 = vector.load %arg5[%c0_5, %c0_6] : memref<32x128xbf16, #tpu.memory_space<vmem>>, vector<32x128xbf16>
    %cst_7 = arith.constant dense<0.000000e+00> : vector<8x128xf32>
    %5 = tpu.matmul %3, %4, %cst_7 {dimension_numbers = #tpu.dot_dimension_numbers<[1], [0], [0], [1], [0, 0, 1, 1], [], []>} : vector<8x32xbf16>, vector<32x128xbf16>, vector<8x128xf32> -> vector<8x128xf32>
    %6 = arith.addf %2, %5 : vector<8x128xf32>
    %c0_8 = arith.constant 0 : index
    %c0_9 = arith.constant 0 : index
    %7 = vector.load %arg3[%c0_8, %c0_9] : memref<8x32xbf16, #tpu.memory_space<vmem>>, vector<8x32xbf16>
    %c0_10 = arith.constant 0 : index
    %c0_11 = arith.constant 0 : index
    %8 = vector.load %arg6[%c0_10, %c0_11] : memref<32x128xbf16, #tpu.memory_space<vmem>>, vector<32x128xbf16>
    %cst_12 = arith.constant dense<0.000000e+00> : vector<8x128xf32>
    %9 = tpu.matmul %7, %8, %cst_12 {dimension_numbers = #tpu.dot_dimension_numbers<[1], [0], [0], [1], [0, 0, 1, 1], [], []>} : vector<8x32xbf16>, vector<32x128xbf16>, vector<8x128xf32> -> vector<8x128xf32>
    %10 = arith.addf %6, %9 : vector<8x128xf32>
    %c0_13 = arith.constant 0 : index
    %c0_14 = arith.constant 0 : index
    %11 = vector.load %arg7[%c0_13, %c0_14] : memref<1x128xf32, #tpu.memory_space<vmem>>, vector<1x128xf32>
    %12 = vector.broadcast %11 : vector<1x128xf32> to vector<8x128xf32>
    %13 = arith.addf %10, %12 : vector<8x128xf32>
    %14 = arith.mulf %13, %13 : vector<8x128xf32>
    %cst_15 = arith.constant 0.797884583 : f32
    %15 = vector.broadcast %cst_15 : f32 to vector<8x128xf32>
    %16 = arith.mulf %15, %13 : vector<8x128xf32>
    %cst_16 = arith.constant 4.471500e-02 : f32
    %17 = vector.broadcast %cst_16 : f32 to vector<8x128xf32>
    %18 = arith.mulf %17, %14 : vector<8x128xf32>
    %cst_17 = arith.constant 1.000000e+00 : f32
    %19 = vector.broadcast %cst_17 : f32 to vector<8x128xf32>
    %20 = arith.addf %19, %18 : vector<8x128xf32>
    %21 = arith.mulf %16, %20 : vector<8x128xf32>
    %cst_18 = arith.constant 5.000000e-01 : f32
    %22 = vector.broadcast %cst_18 : f32 to vector<8x128xf32>
    %23 = arith.mulf %22, %13 : vector<8x128xf32>
    %24 = math.tanh %21 : vector<8x128xf32>
    %cst_19 = arith.constant 1.000000e+00 : f32
    %25 = vector.broadcast %cst_19 : f32 to vector<8x128xf32>
    %26 = arith.addf %25, %24 : vector<8x128xf32>
    %27 = arith.mulf %23, %26 : vector<8x128xf32>
    %c0_20 = arith.constant 0 : index
    %c0_21 = arith.constant 0 : index
    %28 = vector.load %arg8[%c0_20, %c0_21] : memref<8x128xf32, #tpu.memory_space<vmem>>, vector<8x128xf32>
    tpu.vector_store %arg8[%c0_20, %c0_21], %27 {strides = array<i32>} : memref<8x128xf32, #tpu.memory_space<vmem>>, vector<8x128xf32>,
    return
  }
  func.func @transform_0(%arg0: i32) -> (i32, i32) {
    %c0_i32 = arith.constant 0 : i32
    %c0_i32_0 = arith.constant 0 : i32
    return %arg0, %c0_i32 : i32, i32
  }
  func.func @transform_1(%arg0: i32) -> (i32, i32) {
    %c0_i32 = arith.constant 0 : i32
    %c0_i32_0 = arith.constant 0 : i32
    return %arg0, %c0_i32 : i32, i32
  }
  func.func @transform_2(%arg0: i32) -> (i32, i32) {
    %c0_i32 = arith.constant 0 : i32
    %c0_i32_0 = arith.constant 0 : i32
    return %arg0, %c0_i32 : i32, i32
  }
  func.func @transform_3(%arg0: i32) -> (i32, i32) {
    %c0_i32 = arith.constant 0 : i32
    %c0_i32_0 = arith.constant 0 : i32
    %c0_i32_1 = arith.constant 0 : i32
    return %c0_i32, %c0_i32_0 : i32, i32
  }
  func.func @transform_4(%arg0: i32) -> (i32, i32) {
    %c0_i32 = arith.constant 0 : i32
    %c0_i32_0 = arith.constant 0 : i32
    %c0_i32_1 = arith.constant 0 : i32
    return %c0_i32, %c0_i32_0 : i32, i32
  }
  func.func @transform_5(%arg0: i32) -> (i32, i32) {
    %c0_i32 = arith.constant 0 : i32
    %c0_i32_0 = arith.constant 0 : i32
    %c0_i32_1 = arith.constant 0 : i32
    return %c0_i32, %c0_i32_0 : i32, i32
  }
  func.func @transform_6(%arg0: i32) -> (i32, i32) {
    %c0_i32 = arith.constant 0 : i32
    %c0_i32_0 = arith.constant 0 : i32
    %c0_i32_1 = arith.constant 0 : i32
    return %c0_i32, %c0_i32_0 : i32, i32
  }
  func.func @transform_7(%arg0: i32) -> (i32, i32) {
    %c0_i32 = arith.constant 0 : i32
    %c0_i32_0 = arith.constant 0 : i32
    return %arg0, %c0_i32 : i32, i32
  }
}

</mosaic_0001>

<llo_original>
// kernel: tpu_custom_call.1
$region0: #{tpu_custom_call.1}
  #allocation0 [shape = 'u32[]', space=smem, size = 0x4, offset = 0x4, fixed_abs, tag = 'smem constant byte address 0x4 - core index']
  #allocation1 [shape = 'u32[144,128]{1,0:T(1,128)}', space=vmem, size = 0x12000, scoped, tag = 'internal scratch']
  %s0 = inlined_call_operand.hbm [shape: bf16[8,64], index: 0, kind: input, shape index: {}]
  %s1 = inlined_call_operand.hbm [shape: bf16[8,32], index: 1, kind: input, shape index: {}]
  %s2 = inlined_call_operand.hbm [shape: bf16[8,32], index: 2, kind: input, shape index: {}]
  %s3 = inlined_call_operand.hbm [shape: bf16[64,128], index: 3, kind: input, shape index: {}]
  %s4 = inlined_call_operand.hbm [shape: bf16[32,128], index: 4, kind: input, shape index: {}]
  %s5 = inlined_call_operand.hbm [shape: bf16[32,128], index: 5, kind: input, shape index: {}]
  %s6 = inlined_call_operand.vmem [shape: f32[1,128], index: 6, kind: input, shape index: {}]
  %s7 = inlined_call_operand.hbm [shape: f32[8,128], index: 7, kind: output, shape index: {}]
  %s8 = sld [smem:[#allocation0]]
  $region62: #{tpu_custom_call.1} parent=0
    _
  %s10 = ssub.s32 1, %s8
  %s11 = scalar_select 0, %s10, %s8
  $region1: #{tpu_custom_call.1} parent=0
    #allocation2 [shape = 'u8[2048]{0}', space=vmem, size = 0x800, scoped, tag = 'input window, operand 0, single buffered']
    #allocation3 [shape = 's32[1]{0}', space=sflag, size = 0x4, scoped, tag = 'scoped memory for tpu_custom_call.1']
    #allocation4 [shape = 's32[1]{0}', space=sflag, size = 0x4, scoped, tag = 'scoped memory for tpu_custom_call.1']
    #allocation5 [shape = 'u8[2048]{0}', space=vmem, size = 0x800, scoped, tag = 'input window, operand 1, single buffered']
    #allocation6 [shape = 's32[1]{0}', space=sflag, size = 0x4, scoped, tag = 'scoped memory for tpu_custom_call.1']
    #allocation7 [shape = 'u8[2048]{0}', space=vmem, size = 0x800, scoped, tag = 'input window, operand 2, single buffered']
    #allocation8 [shape = 'u8[16384]{0}', space=vmem, size = 0x4000, scoped, tag = 'input window, operand 3, single buffered']
    #allocation9 [shape = 's32[1]{0}', space=sflag, size = 0x4, scoped, tag = 'scoped memory for tpu_custom_call.1']
    #allocation10 [shape = 'u8[8192]{0}', space=vmem, size = 0x2000, scoped, tag = 'input window, operand 4, single buffered']
    #allocation11 [shape = 'u8[8192]{0}', space=vmem, size = 0x2000, scoped, tag = 'input window, operand 5, single buffered']
    #allocation12 [shape = 's32[1]{0}', space=sflag, size = 0x4, scoped, tag = 'scoped memory for tpu_custom_call.1']
    #allocation13 [shape = 'u8[4096]{0}', space=vmem, size = 0x1000, scoped, tag = 'output window, operand 0, single buffered']
    %12 = vsyncpa [#allocation3], 0
    %13 = vsyncpa [#allocation6], 0
    %14 = vsyncpa [#allocation9], 0
    %15 = vsyncpa [#allocation12], 0
    %16 = vsyncpa [#allocation4], 0
    // Predicated region
    $region2: #{tpu_custom_call.1} parent=1 // pred_check
      _
    $region3: #{tpu_custom_call.1} parent=1 // pred_check_branch
      %18 = sbr.rel (0) target = $region5
    $region4: #{tpu_custom_call.1} parent=1 // pred_region
      %s20 = ssub.s32 64, 64
      %21 = vsyncadd [#allocation3], %s20
      %s23 = sshll.u32 [#allocation2], 4
      %s24 = int_to_ptr.vmem [resolvable:$true] %s23
      %26 = dma.hbm_to_vmem [thread:$0]  %s0, 64, %s24, [#allocation3]
    $region5: #{tpu_custom_call.1} parent=1 // pred_fallthru
      _
    // Predicated region
    $region6: #{tpu_custom_call.1} parent=1 // pred_check
      _
    $region7: #{tpu_custom_call.1} parent=1 // pred_check_branch
      %28 = sbr.rel (0) target = $region9
    $region8: #{tpu_custom_call.1} parent=1 // pred_region
      %s30 = ssub.s32 64, 64
      %31 = vsyncadd [#allocation6], %s30
      %s33 = sshll.u32 [#allocation5], 4
      %s34 = int_to_ptr.vmem [resolvable:$true] %s33
      %36 = dma.hbm_to_vmem [thread:$0]  %s1, 64, %s34, [#allocation6]
    $region9: #{tpu_custom_call.1} parent=1 // pred_fallthru
      _
    // Predicated region
    $region10: #{tpu_custom_call.1} parent=1 // pred_check
      _
    $region11: #{tpu_custom_call.1} parent=1 // pred_check_branch
      %38 = sbr.rel (0) target = $region13
    $region12: #{tpu_custom_call.1} parent=1 // pred_region
      %s40 = ssub.s32 64, 64
      %41 = vsyncadd [#allocation6], %s40
      %s43 = sshll.u32 [#allocation7], 4
      %s44 = int_to_ptr.vmem [resolvable:$true] %s43
      %46 = dma.hbm_to_vmem [thread:$0]  %s2, 64, %s44, [#allocation6]
    $region13: #{tpu_custom_call.1} parent=1 // pred_fallthru
      _
    // Predicated region
    $region14: #{tpu_custom_call.1} parent=1 // pred_check
      _
    $region15: #{tpu_custom_call.1} parent=1 // pred_check_branch
      %48 = sbr.rel (0) target = $region17
    $region16: #{tpu_custom_call.1} parent=1 // pred_region
      %s50 = ssub.s32 512, 512
      %51 = vsyncadd [#allocation9], %s50
      %s52 = sshll.u32 [#allocation8], 4
      %s53 = int_to_ptr.vmem [resolvable:$true] %s52
      %58 = dma.hbm_to_vmem [thread:$0]  %s3, 512, %s53, [#allocation9], 64, 64, 4
    $region17: #{tpu_custom_call.1} parent=1 // pred_fallthru
      _
    // Predicated region
    $region18: #{tpu_custom_call.1} parent=1 // pred_check
      _
    $region19: #{tpu_custom_call.1} parent=1 // pred_check_branch
      %60 = sbr.rel (0) target = $region21
    $region20: #{tpu_custom_call.1} parent=1 // pred_region
      %s62 = ssub.s32 256, 256
      %63 = vsyncadd [#allocation9], %s62
      %s64 = sshll.u32 [#allocation10], 4
      %s65 = int_to_ptr.vmem [resolvable:$true] %s64
      %70 = dma.hbm_to_vmem [thread:$0]  %s4, 256, %s65, [#allocation9], 64, 64, 4
    $region21: #{tpu_custom_call.1} parent=1 // pred_fallthru
      _
    // Predicated region
    $region22: #{tpu_custom_call.1} parent=1 // pred_check
      _
    $region23: #{tpu_custom_call.1} parent=1 // pred_check_branch
      %72 = sbr.rel (0) target = $region25
    $region24: #{tpu_custom_call.1} parent=1 // pred_region
      %s74 = ssub.s32 256, 256
      %75 = vsyncadd [#allocation12], %s74
      %s76 = sshll.u32 [#allocation11], 4
      %s77 = int_to_ptr.vmem [resolvable:$true] %s76
      %82 = dma.hbm_to_vmem [thread:$0]  %s5, 256, %s77, [#allocation12], 64, 64, 4
    $region25: #{tpu_custom_call.1} parent=1 // pred_fallthru
      _
    // Predicated region
    $region26: #{tpu_custom_call.1} parent=1 // pred_check
      _
    $region27: #{tpu_custom_call.1} parent=1 // pred_check_branch
      %84 = sbr.rel (0) target = $region29
    $region28: #{tpu_custom_call.1} parent=1 // pred_region
      _
    $region29: #{tpu_custom_call.1} parent=1 // pred_fallthru
      _
    // Predicated region
    $region30: #{tpu_custom_call.1} parent=1 // pred_check
      _
    $region31: #{tpu_custom_call.1} parent=1 // pred_check_branch
      %86 = sbr.rel (0) target = $region33
    $region32: #{tpu_custom_call.1} parent=1 // pred_region
      %87 = dma.done [#allocation3], 64
    $region33: #{tpu_custom_call.1} parent=1 // pred_fallthru
      _
    // Predicated region
    $region34: #{tpu_custom_call.1} parent=1 // pred_check
      _
    $region35: #{tpu_custom_call.1} parent=1 // pred_check_branch
      %89 = sbr.rel (0) target = $region37
    $region36: #{tpu_custom_call.1} parent=1 // pred_region
      %90 = dma.done [#allocation6], 64
    $region37: #{tpu_custom_call.1} parent=1 // pred_fallthru
      _
    // Predicated region
    $region38: #{tpu_custom_call.1} parent=1 // pred_check
      _
    $region39: #{tpu_custom_call.1} parent=1 // pred_check_branch
      %92 = sbr.rel (0) target = $region41
    $region40: #{tpu_custom_call.1} parent=1 // pred_region
      %93 = dma.done [#allocation6], 64
    $region41: #{tpu_custom_call.1} parent=1 // pred_fallthru
      _
    // Predicated region
    $region42: #{tpu_custom_call.1} parent=1 // pred_check
      _
    $region43: #{tpu_custom_call.1} parent=1 // pred_check_branch
      %95 = sbr.rel (0) target = $region45
    $region44: #{tpu_custom_call.1} parent=1 // pred_region
      %96 = dma.done [#allocation9], 512
    $region45: #{tpu_custom_call.1} parent=1 // pred_fallthru
      _
    // Predicated region
    $region46: #{tpu_custom_call.1} parent=1 // pred_check
      _
    $region47: #{tpu_custom_call.1} parent=1 // pred_check_branch
      %98 = sbr.rel (0) target = $region49
    $region48: #{tpu_custom_call.1} parent=1 // pred_region
      %99 = dma.done [#allocation9], 256
    $region49: #{tpu_custom_call.1} parent=1 // pred_fallthru
      _
    // Predicated region
    $region50: #{tpu_custom_call.1} parent=1 // pred_check
      _
    $region51: #{tpu_custom_call.1} parent=1 // pred_check_branch
      %101 = sbr.rel (0) target = $region53
    $region52: #{tpu_custom_call.1} parent=1 // pred_region
      %102 = dma.done [#allocation12], 256
    $region53: #{tpu_custom_call.1} parent=1 // pred_fallthru
      _
    %v104 = vld [vmem:[#allocation2] sm:$0xf]
    %v105 = vld [vmem:[#allocation8] sm:$0xf]
    %v106 = vld [vmem:[#allocation8 + $0x4] sm:$0xf]
    %v107 = vld [vmem:[#allocation8 + $0x8] sm:$0xf]
    %v108 = vld [vmem:[#allocation8 + $0xc] sm:$0xf]
    %v109 = vld [vmem:[#allocation8 + $0x10] sm:$0xf]
    %v110 = vld [vmem:[#allocation8 + $0x14] sm:$0xf]
    %v111 = vld [vmem:[#allocation8 + $0x18] sm:$0xf]
    %v112 = vld [vmem:[#allocation8 + $0x1c] sm:$0xf]
    %v113 = vld [vmem:[#allocation5] sm:$0xf]
    %v114 = vld [vmem:[#allocation10] sm:$0xf]
    %v115 = vld [vmem:[#allocation10 + $0x4] sm:$0xf]
    %v116 = vld [vmem:[#allocation10 + $0x8] sm:$0xf]
    %v117 = vld [vmem:[#allocation10 + $0xc] sm:$0xf]
    %v122 = vunpack.c.l.b16 %v114
    %v123 = vunpack.c.l.b16 %v115
    %v124 = vunpack.c.l.b16 %v116
    %v125 = vunpack.c.l.b16 %v117
    %v126 = vpack.c.b16 %v123, %v122
    %v127 = vpack.c.b16 %v125, %v124
    %vm130 = vcmask 261120
    %v132 = vsel %vm130, %v113, 0
    %134 = vmatprep.subr.bf16.mxu0 0
    %135 = vmatpush1.bf16.msra.mxu0 0
    %136 = vmatprep.subr.bf16.mxu0 0
    %137 = vmatpush1.bf16.msra.mxu0 0
    %138 = vmatprep.subr.bf16.mxu0 0
    %139 = vmatpush1.bf16.msra.mxu0 0
    %140 = vmatprep.subr.bf16.mxu0 0
    %141 = vmatpush1.bf16.msra.mxu0 0
    %142 = vmatprep.subr.bf16.mxu0 0
    %143 = vmatpush1.bf16.msra.mxu0 0
    %144 = vmatprep.subr.bf16.mxu0 0
    %145 = vmatpush1.bf16.msra.mxu0 0
    %146 = vmatprep.subr.bf16.mxu0 0
    %147 = vmatpush1.bf16.msra.mxu0 %v127
    %148 = vmatprep.subr.bf16.mxu0 0
    %149 = vmatpush1.bf16.msra.mxu0 %v126
    %150 = vmatprep.subr.bf16.mxu0 0
    %151 = vmatpush2.bf16.msra.mxu0 0
    %152 = vmatprep.subr.bf16.mxu0 0
    %153 = vmatpush2.bf16.msra.mxu0 0
    %154 = vmatprep.subr.bf16.mxu0 0
    %155 = vmatpush2.bf16.msra.mxu0 0
    %156 = vmatprep.subr.bf16.mxu0 0
    %157 = vmatpush2.bf16.msra.mxu0 0
    %158 = vmatprep.subr.bf16.mxu0 0
    %159 = vmatpush2.bf16.msra.mxu0 0
    %160 = vmatprep.subr.bf16.mxu0 0
    %161 = vmatpush2.bf16.msra.mxu0 0
    %162 = vmatprep.subr.bf16.mxu0 0
    %163 = vmatpush2.bf16.msra.mxu0 0
    %164 = vmatprep.subr.bf16.mxu0 0
    %165 = vmatpush2.bf16.msra.mxu0 0
    %166 = vmatprep.mubr.bf16.mxu0 0
    %167 = vmatmul.mubr.bf16.gmra.mxu0 %v132
    %v168 = vpop.f32.mrf.mxu0
    %v169 = vadd.f32 0.0, %v168
    %v170 = vpop.f32.mrf.mxu0
    %v171 = vpop.f32.mrf.mxu0
    %v172 = vpop.f32.mrf.mxu0
    %173 = vdwg.mxu0
    %v182 = vunpack.c.l.b16 %v105
    %v183 = vunpack.c.l.b16 %v106
    %v184 = vunpack.c.l.b16 %v107
    %v185 = vunpack.c.l.b16 %v108
    %v186 = vunpack.c.l.b16 %v109
    %v187 = vunpack.c.l.b16 %v110
    %v188 = vunpack.c.l.b16 %v111
    %v189 = vunpack.c.l.b16 %v112
    %v190 = vpack.c.b16 %v183, %v182
    %v191 = vpack.c.b16 %v185, %v184
    %v192 = vpack.c.b16 %v187, %v186
    %v193 = vpack.c.b16 %v189, %v188
    %vm198 = vcmask 523264
    %v200 = vsel %vm198, %v104, 0
    %202 = vmatprep.subr.bf16.mxu0 0
    %203 = vmatpush1.bf16.msra.mxu0 0
    %204 = vmatprep.subr.bf16.mxu0 0
    %205 = vmatpush1.bf16.msra.mxu0 0
    %206 = vmatprep.subr.bf16.mxu0 0
    %207 = vmatpush1.bf16.msra.mxu0 0
    %208 = vmatprep.subr.bf16.mxu0 0
    %209 = vmatpush1.bf16.msra.mxu0 0
    %210 = vmatprep.subr.bf16.mxu0 0
    %211 = vmatpush1.bf16.msra.mxu0 %v193
    %212 = vmatprep.subr.bf16.mxu0 0
    %213 = vmatpush1.bf16.msra.mxu0 %v192
    %214 = vmatprep.subr.bf16.mxu0 0
    %215 = vmatpush1.bf16.msra.mxu0 %v191
    %216 = vmatprep.subr.bf16.mxu0 0
    %217 = vmatpush1.bf16.msra.mxu0 %v190
    %218 = vmatprep.subr.bf16.mxu0 0
    %219 = vmatpush2.bf16.msra.mxu0 0
    %220 = vmatprep.subr.bf16.mxu0 0
    %221 = vmatpush2.bf16.msra.mxu0 0
    %222 = vmatprep.subr.bf16.mxu0 0
    %223 = vmatpush2.bf16.msra.mxu0 0
    %224 = vmatprep.subr.bf16.mxu0 0
    %225 = vmatpush2.bf16.msra.mxu0 0
    %226 = vmatprep.subr.bf16.mxu0 0
    %227 = vmatpush2.bf16.msra.mxu0 0
    %228 = vmatprep.subr.bf16.mxu0 0
    %229 = vmatpush2.bf16.msra.mxu0 0
    %230 = vmatprep.subr.bf16.mxu0 0
    %231 = vmatpush2.bf16.msra.mxu0 0
    %232 = vmatprep.subr.bf16.mxu0 0
    %233 = vmatpush2.bf16.msra.mxu0 0
    %234 = vmatprep.mubr.bf16.mxu0 0
    %235 = vmatmul.mubr.bf16.gmra.mxu0 %v200
    %v236 = vpop.f32.mrf.mxu0
    %v237 = vadd.f32 %v169, %v236
    %v238 = vpop.f32.mrf.mxu0
    %v239 = vpop.f32.mrf.mxu0
    %v240 = vpop.f32.mrf.mxu0
    %241 = vdwg.mxu0
    %v242 = vld [vmem:[#allocation7] sm:$0xf]
    %v243 = vld [vmem:[#allocation11] sm:$0xf]
    %v244 = vld [vmem:[#allocation11 + $0x4] sm:$0xf]
    %v245 = vld [vmem:[#allocation11 + $0x8] sm:$0xf]
    %v246 = vld [vmem:[#allocation11 + $0xc] sm:$0xf]
    %v251 = vunpack.c.l.b16 %v243
    %v252 = vunpack.c.l.b16 %v244
    %v253 = vunpack.c.l.b16 %v245
    %v254 = vunpack.c.l.b16 %v246
    %v255 = vpack.c.b16 %v252, %v251
    %v256 = vpack.c.b16 %v254, %v253
    %v260 = vsel %vm130, %v242, 0
    %262 = vmatprep.subr.bf16.mxu0 0
    %263 = vmatpush1.bf16.msra.mxu0 0
    %264 = vmatprep.subr.bf16.mxu0 0
    %265 = vmatpush1.bf16.msra.mxu0 0
    %266 = vmatprep.subr.bf16.mxu0 0
    %267 = vmatpush1.bf16.msra.mxu0 0
    %268 = vmatprep.subr.bf16.mxu0 0
    %269 = vmatpush1.bf16.msra.mxu0 0
    %270 = vmatprep.subr.bf16.mxu0 0
    %271 = vmatpush1.bf16.msra.mxu0 0
    %272 = vmatprep.subr.bf16.mxu0 0
    %273 = vmatpush1.bf16.msra.mxu0 0
    %274 = vmatprep.subr.bf16.mxu0 0
    %275 = vmatpush1.bf16.msra.mxu0 %v256
    %276 = vmatprep.subr.bf16.mxu0 0
    %277 = vmatpush1.bf16.msra.mxu0 %v255
    %278 = vmatprep.subr.bf16.mxu0 0
    %279 = vmatpush2.bf16.msra.mxu0 0
    %280 = vmatprep.subr.bf16.mxu0 0
    %281 = vmatpush2.bf16.msra.mxu0 0
    %282 = vmatprep.subr.bf16.mxu0 0
    %283 = vmatpush2.bf16.msra.mxu0 0
    %284 = vmatprep.subr.bf16.mxu0 0
    %285 = vmatpush2.bf16.msra.mxu0 0
    %286 = vmatprep.subr.bf16.mxu0 0
    %287 = vmatpush2.bf16.msra.mxu0 0
    %288 = vmatprep.subr.bf16.mxu0 0
    %289 = vmatpush2.bf16.msra.mxu0 0
    %290 = vmatprep.subr.bf16.mxu0 0
    %291 = vmatpush2.bf16.msra.mxu0 0
    %292 = vmatprep.subr.bf16.mxu0 0
    %293 = vmatpush2.bf16.msra.mxu0 0
    %294 = vmatprep.mubr.bf16.mxu0 0
    %295 = vmatmul.mubr.bf16.gmra.mxu0 %v260
    %v296 = vpop.f32.mrf.mxu0
    %v297 = vadd.f32 0.0, %v296
    %v298 = vpop.f32.mrf.mxu0
    %v299 = vpop.f32.mrf.mxu0
    %v300 = vpop.f32.mrf.mxu0
    %301 = vdwg.mxu0
    %v302 = vadd.f32 %v237, %v297
    %v303 = vld [vmem:[%s6] sm:$0x1]
    %v305 = vlaneseq
    %v306 = vshrl.u32 %v305, 7
    %v307 = vsub.s32 0, %v306
    %v308 = vrot.slane %v303, %v307
    %v310 = vadd.f32 %v302, %v308
    %v311 = vmul.f32 %v310, %v310
    %v312 = vmul.f32 %v310, 0.7978846
    %v313 = vmul.f32 %v311, 0.044715
    %v314 = vadd.f32 %v313, 1.0
    %v315 = vmul.f32 %v312, %v314
    %v316 = vmul.f32 %v310, 0.5
    %v317 = vtanh.pop %v315
    %v318 = vadd.f32 %v317, 1.0
    %v319 = vmul.f32 %v316, %v318
    %320 = vst [vmem:[#allocation13] sm:$0xff] %v319
    // Predicated region
    $region54: #{tpu_custom_call.1} parent=1 // pred_check
      _
    $region55: #{tpu_custom_call.1} parent=1 // pred_check_branch
      %322 = sbr.rel (0) target = $region57
    $region56: #{tpu_custom_call.1} parent=1 // pred_region
      %s324 = ssub.s32 128, 128
      %325 = vsyncadd [#allocation4], %s324
      %s327 = sshll.u32 [#allocation13], 4
      %s328 = int_to_ptr.vmem [resolvable:$true] %s327
      %330 = dma.vmem_to_hbm [thread:$0]  %s328, 128, %s7, [#allocation4]
    $region57: #{tpu_custom_call.1} parent=1 // pred_fallthru
      _
    // Predicated region
    $region58: #{tpu_custom_call.1} parent=1 // pred_check
      _
    $region59: #{tpu_custom_call.1} parent=1 // pred_check_branch
      %332 = sbr.rel (0) target = $region61
    $region60: #{tpu_custom_call.1} parent=1 // pred_region
      %333 = dma.done [#allocation4], 128
    $region61: #{tpu_custom_call.1} parent=1 // pred_fallthru
      _
    %334 = vsyncpa [#allocation3], 1
    %335 = vsyncpa [#allocation6], 1
    %336 = vsyncpa [#allocation9], 1
    %337 = vsyncpa [#allocation12], 1
    %338 = vsyncpa [#allocation4], 1

</llo_original>
